<compile_context>
chip_gen: v5e
topology: v5e:2x2
jax: 0.10.0
libtpu: 0.0.40
codegen_flags: <defaults>
</compile_context>

<pallas_src>
import functools

import jax
import jax.numpy as jnp
from jax import lax
from jax.experimental import pallas as pl
from jax.experimental.pallas import tpu as pltpu


def _vmem_capacity_bytes():
    try:
        return int(pltpu.get_tpu_info().vmem_capacity_bytes)
    except Exception:
        return 64 * 1024 * 1024          # conservative fallback (v7x per-core VMEM)


# ---------------------------------------------------------------------------
# Kernels
# ---------------------------------------------------------------------------
def bn_fused_kernel(x_ref, gamma_ref, beta_ref, o_ref, mean_ref, var_ref,
                    *, eps, inv_n):
    """Small-N path: x resident in VMEM; stats + normalize in one pass."""
    x = x_ref[...]                                            # [N, C] f32
    mu = jnp.sum(x, axis=0, keepdims=True) * inv_n            # [1, C]
    xc = x - mu
    var = jnp.sum(xc * xc, axis=0, keepdims=True) * inv_n     # centered (stable)
    inv_std = lax.rsqrt(var + eps)                            # EUP rsqrt
    o_ref[...] = (xc * (gamma_ref[...] * inv_std) + beta_ref[...]).astype(o_ref.dtype)
    mean_ref[...] = mu
    var_ref[...] = var


def bn_stats_kernel(x_ref, shift_ref, psum_ref, psumsq_ref, sum_sc, sumsq_sc,
                    *, n_rows, tile_rows, tiles_per_group):
    """Grid = (groups "parallel", row tiles "arbitrary").

    Accumulates shifted per-feature sum / sum-of-squares; ragged last tile and
    out-of-range (clamped) tiles are masked so padded rows contribute zero.
    """
    p = pl.program_id(0)
    t = pl.program_id(1)

    @pl.when(t == 0)
    def _():
        sum_sc[...] = jnp.zeros_like(sum_sc)
        sumsq_sc[...] = jnp.zeros_like(sumsq_sc)

    row0 = (p * tiles_per_group + t) * tile_rows              # unclamped global row
    row_ids = row0 + lax.broadcasted_iota(jnp.int32, x_ref.shape, 0)
    valid = row_ids < n_rows

    xs = jnp.where(valid, x_ref[...] - shift_ref[...], 0.0)   # shifted + masked
    sum_sc[...] += jnp.sum(xs, axis=0, keepdims=True)
    sumsq_sc[...] += jnp.sum(xs * xs, axis=0, keepdims=True)

    @pl.when(t == pl.num_programs(1) - 1)
    def _():
        psum_ref[0] = sum_sc[...]
        psumsq_ref[0] = sumsq_sc[...]


def bn_norm_kernel(x_ref, scale_ref, bias_ref, o_ref):
    """y = x * scale + bias (scale/bias precomputed per feature)."""
    o_ref[...] = (x_ref[...] * scale_ref[...] + bias_ref[...]).astype(o_ref.dtype)


# ---------------------------------------------------------------------------
# Pallas-call wrappers
# ---------------------------------------------------------------------------
def _stats_pass(x, tm, vmem_limit):
    """Returns (batch_mean, batch_var) of shape (C,), biased variance."""
    n, c = x.shape
    num_tiles = -(-n // tm)
    num_groups = 2 if num_tiles >= 2 else 1      # give v7x's 2nd TC a share
    tiles_per_group = -(-num_tiles // num_groups)

    shift = x[0:1, :]                            # per-feature shift (numerics)

    def x_map(p, t):
        # Clamp past-the-end tiles of the last group; those rows are masked.
        return (jnp.minimum(p * tiles_per_group + t, num_tiles - 1), 0)

    psum, psumsq = pl.pallas_call(
        functools.partial(bn_stats_kernel, n_rows=n, tile_rows=tm,
                          tiles_per_group=tiles_per_group),
        out_shape=(jax.ShapeDtypeStruct((num_groups, 1, c), jnp.float32),
                   jax.ShapeDtypeStruct((num_groups, 1, c), jnp.float32)),
        grid=(num_groups, tiles_per_group),
        in_specs=[pl.BlockSpec((tm, c), x_map),
                  pl.BlockSpec((1, c), lambda p, t: (0, 0))],
        out_specs=(pl.BlockSpec((1, 1, c), lambda p, t: (p, 0, 0)),
                   pl.BlockSpec((1, 1, c), lambda p, t: (p, 0, 0))),
        scratch_shapes=[pltpu.VMEM((1, c), jnp.float32),
                        pltpu.VMEM((1, c), jnp.float32)],
        compiler_params=pltpu.CompilerParams(
            dimension_semantics=("parallel", "arbitrary"),
            vmem_limit_bytes=vmem_limit),
    )(x, shift)

    inv_n = 1.0 / n
    sum_s = jnp.sum(psum, axis=0)[0]             # (C,) shifted sum
    sumsq_s = jnp.sum(psumsq, axis=0)[0]
    mean_s = sum_s * inv_n
    var = jnp.maximum(sumsq_s * inv_n - mean_s * mean_s, 0.0)
    mean = shift[0] + mean_s
    return mean, var


def _norm_pass(x, scale, bias, tm, vmem_limit):
    n, c = x.shape
    num_tiles = -(-n // tm)
    return pl.pallas_call(
        bn_norm_kernel,
        out_shape=jax.ShapeDtypeStruct((n, c), jnp.float32),
        grid=(num_tiles,),
        in_specs=[pl.BlockSpec((tm, c), lambda i: (i, 0)),
                  pl.BlockSpec((1, c), lambda i: (0, 0)),
                  pl.BlockSpec((1, c), lambda i: (0, 0))],
        out_specs=pl.BlockSpec((tm, c), lambda i: (i, 0)),
        compiler_params=pltpu.CompilerParams(
            dimension_semantics=("parallel",),
            vmem_limit_bytes=vmem_limit),
    )(x, scale, bias)


def batchnorm1d_node_forward(x, gamma, beta, running_mean, running_var, *,
                             eps=1e-5, momentum=0.1, training=True,
                             tile_rows=None, force_tiled=False):
    """Forward of BatchNorm1dNode applied to node features x: [N, C].

    Returns (y, new_running_mean, new_running_var).
    # TODO(synk): the PyG module carries a `batch` graph container; only
    # batch.x (the node-feature tensor) has a Pallas equivalent — the caller
    # re-attaches y to the batch object.
    """
    n, c = x.shape
    x = x.astype(jnp.float32)
    gamma2 = gamma.reshape(1, c).astype(jnp.float32)
    beta2 = beta.reshape(1, c).astype(jnp.float32)

    vmem_cap = _vmem_capacity_bytes()
    vmem_limit = int(min(vmem_cap // 2, 64 * 1024 * 1024))

    # Row tile: ~4 MiB blocks (multiple of 8 rows); full-extent block when small.
    if tile_rows is not None:
        tm = int(tile_rows)
    else:
        target_bytes = max(min(4 * 1024 * 1024, vmem_limit // 8), 64 * 1024)
        tm = max(target_bytes // (c * 4), 8)
    if tm >= n:
        tm = n                                # full-dim block (exempt from 8-row rule)
    else:
        tm = max((tm // 8) * 8, 8)

    if training:
        fused_max_bytes = max(vmem_limit // 8, 2 * 1024 * 1024)
        if (not force_tiled) and n * c * 4 <= fused_max_bytes:
            # Fused x-resident path: one HBM read of x + one write of y.
            y, mean2d, var2d = pl.pallas_call(
                functools.partial(bn_fused_kernel, eps=eps, inv_n=1.0 / n),
                out_shape=(jax.ShapeDtypeStruct((n, c), jnp.float32),
                           jax.ShapeDtypeStruct((1, c), jnp.float32),
                           jax.ShapeDtypeStruct((1, c), jnp.float32)),
                compiler_params=pltpu.CompilerParams(vmem_limit_bytes=vmem_limit),
            )(x, gamma2, beta2)
            batch_mean, batch_var = mean2d[0], var2d[0]
        else:
            # Tiled two-pass path for large graphs.
            batch_mean, batch_var = _stats_pass(x, tm, vmem_limit)
            scale = gamma2 * lax.rsqrt(batch_var.reshape(1, c) + eps)
            bias = beta2 - batch_mean.reshape(1, c) * scale
            y = _norm_pass(x, scale, bias, tm, vmem_limit)

        # O(C) running-stat bookkeeping stays in plain JAX (matches nn.BatchNorm1d).
        # TODO(synk): PyTorch raises for N==1 (unbiased var undefined); guarded here.
        unbiased_var = batch_var * (n / max(n - 1, 1))
        new_running_mean = (1.0 - momentum) * running_mean + momentum * batch_mean
        new_running_var = (1.0 - momentum) * running_var + momentum * unbiased_var
    else:
        rv = running_var.reshape(1, c).astype(jnp.float32)
        rm = running_mean.reshape(1, c).astype(jnp.float32)
        scale = gamma2 * lax.rsqrt(rv + eps)
        bias = beta2 - rm * scale
        y = _norm_pass(x, scale, bias, tm, vmem_limit)
        new_running_mean, new_running_var = running_mean, running_var

    return y, new_running_mean, new_running_var


# ---------------------------------------------------------------------------
# Pure-JAX references
# ---------------------------------------------------------------------------
def reference_bn_train(x, gamma, beta, running_mean, running_var, eps, momentum):
    n = x.shape[0]
    mean = x.mean(axis=0)
    var = x.var(axis=0)                                   # biased
    y = (x - mean) / jnp.sqrt(var + eps) * gamma + beta
    rm = (1.0 - momentum) * running_mean + momentum * mean
    rv = (1.0 - momentum) * running_var + momentum * (var * n / (n - 1))
    return y, rm, rv


def reference_bn_eval(x, gamma, beta, running_mean, running_var, eps):
    return (x - running_mean) / jnp.sqrt(running_var + eps) * gamma + beta


if __name__ == "__main__":
    # Small deterministic problem: N=300 nodes, dim_in=96 features (ragged in
    # both rows and lanes on purpose). eps / momentum = module defaults.
    N, DIM_IN = 300, 96
    EPS, MOM = 1e-5, 0.1

    key = jax.random.PRNGKey(0)
    k_x, k_g, k_b = jax.random.split(key, 3)
    x = jax.random.normal(k_x, (N, DIM_IN), dtype=jnp.float32) * 1.5 + 0.3
    gamma = 1.0 + 0.1 * jax.random.normal(k_g, (DIM_IN,), dtype=jnp.float32)
    beta = 0.1 * jax.random.normal(k_b, (DIM_IN,), dtype=jnp.float32)
    running_mean = jnp.zeros((DIM_IN,), dtype=jnp.float32)   # PyTorch init
    running_var = jnp.ones((DIM_IN,), dtype=jnp.float32)

    y_ref, rm_ref, rv_ref = reference_bn_train(x, gamma, beta, running_mean,
                                               running_var, EPS, MOM)

    # 1) Default dispatch -> fused x-resident kernel (graph fits in VMEM).
    y, rm, rv = batchnorm1d_node_forward(x, gamma, beta, running_mean, running_var,
                                         eps=EPS, momentum=MOM, training=True)
    y = jax.block_until_ready(y)
    assert y.shape == (N, DIM_IN)
    assert jnp.allclose(y, y_ref, atol=1e-4, rtol=1e-4), "fused: output mismatch"
    assert jnp.allclose(rm, rm_ref, atol=1e-5, rtol=1e-5), "fused: running_mean mismatch"
    assert jnp.allclose(rv, rv_ref, atol=1e-4, rtol=1e-4), "fused: running_var mismatch"

    # 2) Tiled two-pass path (what large graphs take), forced with tiny tiles so
    #    the ragged last tile, parallel stats groups and masking are exercised.
    y2, rm2, rv2 = batchnorm1d_node_forward(x, gamma, beta, running_mean, running_var,
                                            eps=EPS, momentum=MOM, training=True,
                                            force_tiled=True, tile_rows=128)
    y2 = jax.block_until_ready(y2)
    assert jnp.allclose(y2, y_ref, atol=1e-4, rtol=1e-4), "tiled: output mismatch"
    assert jnp.allclose(rm2, rm_ref, atol=1e-5, rtol=1e-5), "tiled: running_mean mismatch"
    assert jnp.allclose(rv2, rv_ref, atol=1e-4, rtol=1e-4), "tiled: running_var mismatch"

    # 3) Eval mode: normalize with running statistics (norm pass only).
    y3, _, _ = batchnorm1d_node_forward(x, gamma, beta, rm_ref, rv_ref,
                                        eps=EPS, momentum=MOM, training=False)
    y3 = jax.block_until_ready(y3)
    y3_ref = reference_bn_eval(x, gamma, beta, rm_ref, rv_ref, EPS)
    assert jnp.allclose(y3, y3_ref, atol=1e-4, rtol=1e-4), "eval: output mismatch"

    print("KERNEL_OK")
</pallas_src>

<mosaic_0001>
module attributes {stable_mosaic.version = 11 : i64} {
  func.func @bn_fused_kernel(%arg0: memref<300x96xf32, #tpu.memory_space<vmem>>, %arg1: memref<1x96xf32, #tpu.memory_space<vmem>>, %arg2: memref<1x96xf32, #tpu.memory_space<vmem>>, %arg3: memref<300x96xf32, #tpu.memory_space<vmem>>, %arg4: memref<1x96xf32, #tpu.memory_space<vmem>>, %arg5: memref<1x96xf32, #tpu.memory_space<vmem>>) attributes {dimension_semantics = [], scalar_prefetch = 0 : i64, scratch_operands = 0 : i64, tpu.core_type = #tpu.core_type<tc>} {
    %c0 = arith.constant 0 : index
    %c0_0 = arith.constant 0 : index
    %0 = vector.load %arg0[%c0, %c0_0] : memref<300x96xf32, #tpu.memory_space<vmem>>, vector<300x96xf32>
    %cst = arith.constant dense<0.000000e+00> : vector<96xf32>
    %1 = vector.multi_reduction <add>, %0, %cst [0] : vector<300x96xf32> to vector<96xf32>
    %2 = vector.shape_cast %1 : vector<96xf32> to vector<1x96xf32>
    %cst_1 = arith.constant 0.00333333341 : f32
    %3 = vector.broadcast %cst_1 : f32 to vector<1x96xf32>
    %4 = arith.mulf %2, %3 : vector<1x96xf32>
    %5 = vector.broadcast %4 : vector<1x96xf32> to vector<300x96xf32>
    %6 = arith.subf %0, %5 : vector<300x96xf32>
    %7 = arith.mulf %6, %6 : vector<300x96xf32>
    %cst_2 = arith.constant dense<0.000000e+00> : vector<96xf32>
    %8 = vector.multi_reduction <add>, %7, %cst_2 [0] : vector<300x96xf32> to vector<96xf32>
    %9 = vector.shape_cast %8 : vector<96xf32> to vector<1x96xf32>
    %cst_3 = arith.constant 0.00333333341 : f32
    %10 = vector.broadcast %cst_3 : f32 to vector<1x96xf32>
    %11 = arith.mulf %9, %10 : vector<1x96xf32>
    %cst_4 = arith.constant 9.99999974E-6 : f32
    %12 = vector.broadcast %cst_4 : f32 to vector<1x96xf32>
    %13 = arith.addf %11, %12 : vector<1x96xf32>
    %14 = math.rsqrt %13 : vector<1x96xf32>
    %c0_5 = arith.constant 0 : index
    %c0_6 = arith.constant 0 : index
    %15 = vector.load %arg1[%c0_5, %c0_6] : memref<1x96xf32, #tpu.memory_space<vmem>>, vector<1x96xf32>
    %16 = arith.mulf %15, %14 : vector<1x96xf32>
    %17 = vector.broadcast %16 : vector<1x96xf32> to vector<300x96xf32>
    %18 = arith.mulf %6, %17 : vector<300x96xf32>
    %c0_7 = arith.constant 0 : index
    %c0_8 = arith.constant 0 : index
    %19 = vector.load %arg2[%c0_7, %c0_8] : memref<1x96xf32, #tpu.memory_space<vmem>>, vector<1x96xf32>
    %20 = vector.broadcast %19 : vector<1x96xf32> to vector<300x96xf32>
    %21 = arith.addf %18, %20 : vector<300x96xf32>
    %c0_9 = arith.constant 0 : index
    %c0_10 = arith.constant 0 : index
    %22 = vector.load %arg3[%c0_9, %c0_10] : memref<300x96xf32, #tpu.memory_space<vmem>>, vector<300x96xf32>
    tpu.vector_store %arg3[%c0_9, %c0_10], %21 {strides = array<i32>} : memref<300x96xf32, #tpu.memory_space<vmem>>, vector<300x96xf32>,
    %c0_11 = arith.constant 0 : index
    %c0_12 = arith.constant 0 : index
    %23 = vector.load %arg4[%c0_11, %c0_12] : memref<1x96xf32, #tpu.memory_space<vmem>>, vector<1x96xf32>
    tpu.vector_store %arg4[%c0_11, %c0_12], %4 {strides = array<i32>} : memref<1x96xf32, #tpu.memory_space<vmem>>, vector<1x96xf32>,
    %c0_13 = arith.constant 0 : index
    %c0_14 = arith.constant 0 : index
    %24 = vector.load %arg5[%c0_13, %c0_14] : memref<1x96xf32, #tpu.memory_space<vmem>>, vector<1x96xf32>
    tpu.vector_store %arg5[%c0_13, %c0_14], %11 {strides = array<i32>} : memref<1x96xf32, #tpu.memory_space<vmem>>, vector<1x96xf32>,
    return
  }
}

</mosaic_0001>

<llo_original>
// kernel: tpu_custom_call.1
$region0: #{tpu_custom_call.1}
  #allocation0 [shape = 'u32[]', space=smem, size = 0x4, offset = 0x4, fixed_abs, tag = 'smem constant byte address 0x4 - core index']
  #allocation1 [shape = 'u32[72,128]{1,0:T(1,128)}', space=vmem, size = 0x9000, scoped, tag = 'internal scratch']
  %s0 = inlined_call_operand.vmem [shape: f32[300,96], index: 0, kind: input, shape index: {}]
  %s1 = inlined_call_operand.vmem [shape: f32[1,96], index: 1, kind: input, shape index: {}]
  %s2 = inlined_call_operand.vmem [shape: f32[1,96], index: 2, kind: input, shape index: {}]
  %s3 = inlined_call_operand.vmem [shape: f32[300,96], index: 3, kind: output, shape index: {0}]
  %s4 = inlined_call_operand.hbm [shape: f32[1,96], index: 4, kind: output, shape index: {1}]
  %s5 = inlined_call_operand.hbm [shape: f32[1,96], index: 5, kind: output, shape index: {2}]
  %6 = xla_tuple %s3, %s4, %s5
  %s7 = sld [smem:[#allocation0]]
  $region38: #{tpu_custom_call.1} parent=0
    _
  %s9 = ssub.s32 1, %s7
  %s10 = scalar_select 0, %s9, %s7
  $region1: #{tpu_custom_call.1} parent=0
    #allocation2 [shape = 'u8[512]{0}', space=vmem, size = 0x400, scoped, tag = 'output window, operand 1, single buffered']
    #allocation3 [shape = 's32[1]{0}', space=sflag, size = 0x4, scoped, tag = 'scoped memory for tpu_custom_call.1']
    #allocation4 [shape = 'u8[512]{0}', space=vmem, size = 0x400, scoped, tag = 'output window, operand 2, single buffered']
    #allocation5 [shape = 's32[1]{0}', space=sflag, size = 0x4, scoped, tag = 'scoped memory for tpu_custom_call.1']
    %11 = vsyncpa [#allocation3], 0
    %12 = vsyncpa [#allocation5], 0
    // Predicated region
    $region2: #{tpu_custom_call.1} parent=1 // pred_check
      _
    $region3: #{tpu_custom_call.1} parent=1 // pred_check_branch
      %14 = sbr.rel (0) target = $region5
    $region4: #{tpu_custom_call.1} parent=1 // pred_region
      _
    $region5: #{tpu_custom_call.1} parent=1 // pred_fallthru
      _
    // Predicated region
    $region6: #{tpu_custom_call.1} parent=1 // pred_check
      _
    $region7: #{tpu_custom_call.1} parent=1 // pred_check_branch
      %16 = sbr.rel (0) target = $region9
    $region8: #{tpu_custom_call.1} parent=1 // pred_region
      _
    $region9: #{tpu_custom_call.1} parent=1 // pred_fallthru
      _
    // Predicated region
    $region10: #{tpu_custom_call.1} parent=1 // pred_check
      _
    $region11: #{tpu_custom_call.1} parent=1 // pred_check_branch
      %18 = sbr.rel (0) target = $region13
    $region12: #{tpu_custom_call.1} parent=1 // pred_region
      _
    $region13: #{tpu_custom_call.1} parent=1 // pred_fallthru
      _
    %v19 = vld [vmem:[%s0] sm:$0xff]
    %v20 = vld [vmem:[%s0 + $0x8] sm:$0xff]
    %v21 = vld [vmem:[%s0 + $0x10] sm:$0xff]
    %v22 = vld [vmem:[%s0 + $0x18] sm:$0xff]
    %v23 = vld [vmem:[%s0 + $0x20] sm:$0xff]
    %v24 = vld [vmem:[%s0 + $0x28] sm:$0xff]
    %v25 = vld [vmem:[%s0 + $0x30] sm:$0xff]
    %v26 = vld [vmem:[%s0 + $0x38] sm:$0xff]
    %v27 = vld [vmem:[%s0 + $0x40] sm:$0xff]
    %v28 = vld [vmem:[%s0 + $0x48] sm:$0xff]
    %v29 = vld [vmem:[%s0 + $0x50] sm:$0xff]
    %v30 = vld [vmem:[%s0 + $0x58] sm:$0xff]
    %v31 = vld [vmem:[%s0 + $0x60] sm:$0xff]
    %v32 = vld [vmem:[%s0 + $0x68] sm:$0xff]
    %v33 = vld [vmem:[%s0 + $0x70] sm:$0xff]
    %v34 = vld [vmem:[%s0 + $0x78] sm:$0xff]
    %v35 = vld [vmem:[%s0 + $0x80] sm:$0xff]
    %v36 = vld [vmem:[%s0 + $0x88] sm:$0xff]
    %v37 = vld [vmem:[%s0 + $0x90] sm:$0xff]
    %v38 = vld [vmem:[%s0 + $0x98] sm:$0xff]
    %v39 = vld [vmem:[%s0 + $0xa0] sm:$0xff]
    %v40 = vld [vmem:[%s0 + $0xa8] sm:$0xff]
    %v41 = vld [vmem:[%s0 + $0xb0] sm:$0xff]
    %v42 = vld [vmem:[%s0 + $0xb8] sm:$0xff]
    %v43 = vld [vmem:[%s0 + $0xc0] sm:$0xff]
    %v44 = vld [vmem:[%s0 + $0xc8] sm:$0xff]
    %v45 = vld [vmem:[%s0 + $0xd0] sm:$0xff]
    %v46 = vld [vmem:[%s0 + $0xd8] sm:$0xff]
    %v47 = vld [vmem:[%s0 + $0xe0] sm:$0xff]
    %v48 = vld [vmem:[%s0 + $0xe8] sm:$0xff]
    %v49 = vld [vmem:[%s0 + $0xf0] sm:$0xff]
    %v50 = vld [vmem:[%s0 + $0xf8] sm:$0xff]
    %v51 = vld [vmem:[%s0 + $0x100] sm:$0xff]
    %v52 = vld [vmem:[%s0 + $0x108] sm:$0xff]
    %v53 = vld [vmem:[%s0 + $0x110] sm:$0xff]
    %v54 = vld [vmem:[%s0 + $0x118] sm:$0xff]
    %v55 = vld [vmem:[%s0 + $0x120] sm:$0xff]
    %v56 = vld [vmem:[%s0 + $0x128] sm:$0xf]
    %vm57 = vcmask 785408
    %v58 = vsel %vm57, %v19, 0.0
    %v59 = vsel %vm57, %v20, 0.0
    %v60 = vadd.f32 %v58, %v59
    %v61 = vsel %vm57, %v21, 0.0
    %v62 = vadd.f32 %v60, %v61
    %v63 = vsel %vm57, %v22, 0.0
    %v64 = vadd.f32 %v62, %v63
    %v65 = vsel %vm57, %v23, 0.0
    %v66 = vadd.f32 %v64, %v65
    %v67 = vsel %vm57, %v24, 0.0
    %v68 = vadd.f32 %v66, %v67
    %v69 = vsel %vm57, %v25, 0.0
    %v70 = vadd.f32 %v68, %v69
    %v71 = vsel %vm57, %v26, 0.0
    %v72 = vadd.f32 %v70, %v71
    %v73 = vsel %vm57, %v27, 0.0
    %v74 = vadd.f32 %v72, %v73
    %v75 = vsel %vm57, %v28, 0.0
    %v76 = vadd.f32 %v74, %v75
    %v77 = vsel %vm57, %v29, 0.0
    %v78 = vadd.f32 %v76, %v77
    %v79 = vsel %vm57, %v30, 0.0
    %v80 = vadd.f32 %v78, %v79
    %v81 = vsel %vm57, %v31, 0.0
    %v82 = vadd.f32 %v80, %v81
    %v83 = vsel %vm57, %v32, 0.0
    %v84 = vadd.f32 %v82, %v83
    %v85 = vsel %vm57, %v33, 0.0
    %v86 = vadd.f32 %v84, %v85
    %v87 = vsel %vm57, %v34, 0.0
    %v88 = vadd.f32 %v86, %v87
    %v89 = vsel %vm57, %v35, 0.0
    %v90 = vadd.f32 %v88, %v89
    %v91 = vsel %vm57, %v36, 0.0
    %v92 = vadd.f32 %v90, %v91
    %v93 = vsel %vm57, %v37, 0.0
    %v94 = vadd.f32 %v92, %v93
    %v95 = vsel %vm57, %v38, 0.0
    %v96 = vadd.f32 %v94, %v95
    %v97 = vsel %vm57, %v39, 0.0
    %v98 = vadd.f32 %v96, %v97
    %v99 = vsel %vm57, %v40, 0.0
    %v100 = vadd.f32 %v98, %v99
    %v101 = vsel %vm57, %v41, 0.0
    %v102 = vadd.f32 %v100, %v101
    %v103 = vsel %vm57, %v42, 0.0
    %v104 = vadd.f32 %v102, %v103
    %v105 = vsel %vm57, %v43, 0.0
    %v106 = vadd.f32 %v104, %v105
    %v107 = vsel %vm57, %v44, 0.0
    %v108 = vadd.f32 %v106, %v107
    %v109 = vsel %vm57, %v45, 0.0
    %v110 = vadd.f32 %v108, %v109
    %v111 = vsel %vm57, %v46, 0.0
    %v112 = vadd.f32 %v110, %v111
    %v113 = vsel %vm57, %v47, 0.0
    %v114 = vadd.f32 %v112, %v113
    %v115 = vsel %vm57, %v48, 0.0
    %v116 = vadd.f32 %v114, %v115
    %v117 = vsel %vm57, %v49, 0.0
    %v118 = vadd.f32 %v116, %v117
    %v119 = vsel %vm57, %v50, 0.0
    %v120 = vadd.f32 %v118, %v119
    %v121 = vsel %vm57, %v51, 0.0
    %v122 = vadd.f32 %v120, %v121
    %v123 = vsel %vm57, %v52, 0.0
    %v124 = vadd.f32 %v122, %v123
    %v125 = vsel %vm57, %v53, 0.0
    %v126 = vadd.f32 %v124, %v125
    %v127 = vsel %vm57, %v54, 0.0
    %v128 = vadd.f32 %v126, %v127
    %v129 = vsel %vm57, %v55, 0.0
    %v130 = vadd.f32 %v128, %v129
    %vm131 = vcmask 781312
    %v132 = vsel %vm131, %v56, 0.0
    %v133 = vadd.f32 %v130, %v132
    %v134 = vrot.slane %v133, 4
    %v135 = vadd.f32 %v133, %v134
    %v136 = vrot.slane %v135, 2
    %v137 = vadd.f32 %v135, %v136
    %v138 = vrot.slane %v137, 1
    %v139 = vadd.f32 %v137, %v138
    %v140 = vmul.f32 %v139, 0.0033333334
    %v141 = vsub.f32 %v19, %v140
    %v142 = vsub.f32 %v20, %v140
    %v143 = vsub.f32 %v21, %v140
    %v144 = vsub.f32 %v22, %v140
    %v145 = vsub.f32 %v23, %v140
    %v146 = vsub.f32 %v24, %v140
    %v147 = vsub.f32 %v25, %v140
    %v148 = vsub.f32 %v26, %v140
    %v149 = vsub.f32 %v27, %v140
    %v150 = vsub.f32 %v28, %v140
    %v151 = vsub.f32 %v29, %v140
    %v152 = vsub.f32 %v30, %v140
    %v153 = vsub.f32 %v31, %v140
    %v154 = vsub.f32 %v32, %v140
    %v155 = vsub.f32 %v33, %v140
    %v156 = vsub.f32 %v34, %v140
    %v157 = vsub.f32 %v35, %v140
    %v158 = vsub.f32 %v36, %v140
    %v159 = vsub.f32 %v37, %v140
    %v160 = vsub.f32 %v38, %v140
    %v161 = vsub.f32 %v39, %v140
    %v162 = vsub.f32 %v40, %v140
    %v163 = vsub.f32 %v41, %v140
    %v164 = vsub.f32 %v42, %v140
    %v165 = vsub.f32 %v43, %v140
    %v166 = vsub.f32 %v44, %v140
    %v167 = vsub.f32 %v45, %v140
    %v168 = vsub.f32 %v46, %v140
    %v169 = vsub.f32 %v47, %v140
    %v170 = vsub.f32 %v48, %v140
    %v171 = vsub.f32 %v49, %v140
    %v172 = vsub.f32 %v50, %v140
    %v173 = vsub.f32 %v51, %v140
    %v174 = vsub.f32 %v52, %v140
    %v175 = vsub.f32 %v53, %v140
    %v176 = vsub.f32 %v54, %v140
    %v177 = vsub.f32 %v55, %v140
    %v178 = vsub.f32 %v56, %v140
    %v179 = vmul.f32 %v141, %v141
    %v180 = vmul.f32 %v142, %v142
    %v181 = vmul.f32 %v143, %v143
    %v182 = vmul.f32 %v144, %v144
    %v183 = vmul.f32 %v145, %v145
    %v184 = vmul.f32 %v146, %v146
    %v185 = vmul.f32 %v147, %v147
    %v186 = vmul.f32 %v148, %v148
    %v187 = vmul.f32 %v149, %v149
    %v188 = vmul.f32 %v150, %v150
    %v189 = vmul.f32 %v151, %v151
    %v190 = vmul.f32 %v152, %v152
    %v191 = vmul.f32 %v153, %v153
    %v192 = vmul.f32 %v154, %v154
    %v193 = vmul.f32 %v155, %v155
    %v194 = vmul.f32 %v156, %v156
    %v195 = vmul.f32 %v157, %v157
    %v196 = vmul.f32 %v158, %v158
    %v197 = vmul.f32 %v159, %v159
    %v198 = vmul.f32 %v160, %v160
    %v199 = vmul.f32 %v161, %v161
    %v200 = vmul.f32 %v162, %v162
    %v201 = vmul.f32 %v163, %v163
    %v202 = vmul.f32 %v164, %v164
    %v203 = vmul.f32 %v165, %v165
    %v204 = vmul.f32 %v166, %v166
    %v205 = vmul.f32 %v167, %v167
    %v206 = vmul.f32 %v168, %v168
    %v207 = vmul.f32 %v169, %v169
    %v208 = vmul.f32 %v170, %v170
    %v209 = vmul.f32 %v171, %v171
    %v210 = vmul.f32 %v172, %v172
    %v211 = vmul.f32 %v173, %v173
    %v212 = vmul.f32 %v174, %v174
    %v213 = vmul.f32 %v175, %v175
    %v214 = vmul.f32 %v176, %v176
    %v215 = vmul.f32 %v177, %v177
    %v216 = vmul.f32 %v178, %v178
    %v217 = vsel %vm57, %v179, 0.0
    %v218 = vsel %vm57, %v180, 0.0
    %v219 = vadd.f32 %v217, %v218
    %v220 = vsel %vm57, %v181, 0.0
    %v221 = vadd.f32 %v219, %v220
    %v222 = vsel %vm57, %v182, 0.0
    %v223 = vadd.f32 %v221, %v222
    %v224 = vsel %vm57, %v183, 0.0
    %v225 = vadd.f32 %v223, %v224
    %v226 = vsel %vm57, %v184, 0.0
    %v227 = vadd.f32 %v225, %v226
    %v228 = vsel %vm57, %v185, 0.0
    %v229 = vadd.f32 %v227, %v228
    %v230 = vsel %vm57, %v186, 0.0
    %v231 = vadd.f32 %v229, %v230
    %v232 = vsel %vm57, %v187, 0.0
    %v233 = vadd.f32 %v231, %v232
    %v234 = vsel %vm57, %v188, 0.0
    %v235 = vadd.f32 %v233, %v234
    %v236 = vsel %vm57, %v189, 0.0
    %v237 = vadd.f32 %v235, %v236
    %v238 = vsel %vm57, %v190, 0.0
    %v239 = vadd.f32 %v237, %v238
    %v240 = vsel %vm57, %v191, 0.0
    %v241 = vadd.f32 %v239, %v240
    %v242 = vsel %vm57, %v192, 0.0
    %v243 = vadd.f32 %v241, %v242
    %v244 = vsel %vm57, %v193, 0.0
    %v245 = vadd.f32 %v243, %v244
    %v246 = vsel %vm57, %v194, 0.0
    %v247 = vadd.f32 %v245, %v246
    %v248 = vsel %vm57, %v195, 0.0
    %v249 = vadd.f32 %v247, %v248
    %v250 = vsel %vm57, %v196, 0.0
    %v251 = vadd.f32 %v249, %v250
    %v252 = vsel %vm57, %v197, 0.0
    %v253 = vadd.f32 %v251, %v252
    %v254 = vsel %vm57, %v198, 0.0
    %v255 = vadd.f32 %v253, %v254
    %v256 = vsel %vm57, %v199, 0.0
    %v257 = vadd.f32 %v255, %v256
    %v258 = vsel %vm57, %v200, 0.0
    %v259 = vadd.f32 %v257, %v258
    %v260 = vsel %vm57, %v201, 0.0
    %v261 = vadd.f32 %v259, %v260
    %v262 = vsel %vm57, %v202, 0.0
    %v263 = vadd.f32 %v261, %v262
    %v264 = vsel %vm57, %v203, 0.0
    %v265 = vadd.f32 %v263, %v264
    %v266 = vsel %vm57, %v204, 0.0
    %v267 = vadd.f32 %v265, %v266
    %v268 = vsel %vm57, %v205, 0.0
    %v269 = vadd.f32 %v267, %v268
    %v270 = vsel %vm57, %v206, 0.0
    %v271 = vadd.f32 %v269, %v270
    %v272 = vsel %vm57, %v207, 0.0
    %v273 = vadd.f32 %v271, %v272
    %v274 = vsel %vm57, %v208, 0.0
    %v275 = vadd.f32 %v273, %v274
    %v276 = vsel %vm57, %v209, 0.0
    %v277 = vadd.f32 %v275, %v276
    %v278 = vsel %vm57, %v210, 0.0
    %v279 = vadd.f32 %v277, %v278
    %v280 = vsel %vm57, %v211, 0.0
    %v281 = vadd.f32 %v279, %v280
    %v282 = vsel %vm57, %v212, 0.0
    %v283 = vadd.f32 %v281, %v282
    %v284 = vsel %vm57, %v213, 0.0
    %v285 = vadd.f32 %v283, %v284
    %v286 = vsel %vm57, %v214, 0.0
    %v287 = vadd.f32 %v285, %v286
    %v288 = vsel %vm57, %v215, 0.0
    %v289 = vadd.f32 %v287, %v288
    %v290 = vsel %vm131, %v216, 0.0
    %v291 = vadd.f32 %v289, %v290
    %v292 = vrot.slane %v291, 4
    %v293 = vadd.f32 %v291, %v292
    %v294 = vrot.slane %v293, 2
    %v295 = vadd.f32 %v293, %v294
    %v296 = vrot.slane %v295, 1
    %v297 = vadd.f32 %v295, %v296
    %v298 = vmul.f32 %v297, 0.0033333334
    %v299 = vadd.f32 %v298, 1e-05
    %v300 = vrsqrt.pop %v299
    %v301 = vmul.f32 %v300, %v299
    %v302 = vmul.f32 %v301, %v300
    %v303 = vmul.f32 0.5, %v302
    %v304 = vsub.f32 1.5, %v303
    %v305 = vmul.f32 %v300, %v304
    %vm306 = vweird.f32 %v299
    %vm307 = vweird.f32 %v300
    %vm308 = vmor %vm306, %vm307
    %v309 = vsel %vm308, %v300, %v305
    %v310 = vld [vmem:[%s1] sm:$0x1]
    %v311 = vmul.f32 %v310, %v309
    %v313 = vperm.slane %v311, 0
    %v315 = vmul.f32 %v141, %v313
    %v316 = vmul.f32 %v142, %v313
    %v317 = vmul.f32 %v143, %v313
    %v318 = vmul.f32 %v144, %v313
    %v319 = vmul.f32 %v145, %v313
    %v320 = vmul.f32 %v146, %v313
    %v321 = vmul.f32 %v147, %v313
    %v322 = vmul.f32 %v148, %v313
    %v323 = vmul.f32 %v149, %v313
    %v324 = vmul.f32 %v150, %v313
    %v325 = vmul.f32 %v151, %v313
    %v326 = vmul.f32 %v152, %v313
    %v327 = vmul.f32 %v153, %v313
    %v328 = vmul.f32 %v154, %v313
    %v329 = vmul.f32 %v155, %v313
    %v330 = vmul.f32 %v156, %v313
    %v331 = vmul.f32 %v157, %v313
    %v332 = vmul.f32 %v158, %v313
    %v333 = vmul.f32 %v159, %v313
    %v334 = vmul.f32 %v160, %v313
    %v335 = vmul.f32 %v161, %v313
    %v336 = vmul.f32 %v162, %v313
    %v337 = vmul.f32 %v163, %v313
    %v338 = vmul.f32 %v164, %v313
    %v339 = vmul.f32 %v165, %v313
    %v340 = vmul.f32 %v166, %v313
    %v341 = vmul.f32 %v167, %v313
    %v342 = vmul.f32 %v168, %v313
    %v343 = vmul.f32 %v169, %v313
    %v344 = vmul.f32 %v170, %v313
    %v345 = vmul.f32 %v171, %v313
    %v346 = vmul.f32 %v172, %v313
    %v347 = vmul.f32 %v173, %v313
    %v348 = vmul.f32 %v174, %v313
    %v349 = vmul.f32 %v175, %v313
    %v350 = vmul.f32 %v176, %v313
    %v351 = vmul.f32 %v177, %v313
    %v352 = vmul.f32 %v178, %v313
    %v353 = vld [vmem:[%s2] sm:$0x1]
    %v355 = vperm.slane %v353, 0
    %v357 = vadd.f32 %v315, %v355
    %v358 = vadd.f32 %v316, %v355
    %v359 = vadd.f32 %v317, %v355
    %v360 = vadd.f32 %v318, %v355
    %v361 = vadd.f32 %v319, %v355
    %v362 = vadd.f32 %v320, %v355
    %v363 = vadd.f32 %v321, %v355
    %v364 = vadd.f32 %v322, %v355
    %v365 = vadd.f32 %v323, %v355
    %v366 = vadd.f32 %v324, %v355
    %v367 = vadd.f32 %v325, %v355
    %v368 = vadd.f32 %v326, %v355
    %v369 = vadd.f32 %v327, %v355
    %v370 = vadd.f32 %v328, %v355
    %v371 = vadd.f32 %v329, %v355
    %v372 = vadd.f32 %v330, %v355
    %v373 = vadd.f32 %v331, %v355
    %v374 = vadd.f32 %v332, %v355
    %v375 = vadd.f32 %v333, %v355
    %v376 = vadd.f32 %v334, %v355
    %v377 = vadd.f32 %v335, %v355
    %v378 = vadd.f32 %v336, %v355
    %v379 = vadd.f32 %v337, %v355
    %v380 = vadd.f32 %v338, %v355
    %v381 = vadd.f32 %v339, %v355
    %v382 = vadd.f32 %v340, %v355
    %v383 = vadd.f32 %v341, %v355
    %v384 = vadd.f32 %v342, %v355
    %v385 = vadd.f32 %v343, %v355
    %v386 = vadd.f32 %v344, %v355
    %v387 = vadd.f32 %v345, %v355
    %v388 = vadd.f32 %v346, %v355
    %v389 = vadd.f32 %v347, %v355
    %v390 = vadd.f32 %v348, %v355
    %v391 = vadd.f32 %v349, %v355
    %v392 = vadd.f32 %v350, %v355
    %v393 = vadd.f32 %v351, %v355
    %v394 = vadd.f32 %v352, %v355
    %395 = vst.msk [vmem:[%s3] sm:$0xff] %vm57, %v357
    %396 = vst.msk [vmem:[%s3 + $0x8] sm:$0xff] %vm57, %v358
    %397 = vst.msk [vmem:[%s3 + $0x10] sm:$0xff] %vm57, %v359
    %398 = vst.msk [vmem:[%s3 + $0x18] sm:$0xff] %vm57, %v360
    %399 = vst.msk [vmem:[%s3 + $0x20] sm:$0xff] %vm57, %v361
    %400 = vst.msk [vmem:[%s3 + $0x28] sm:$0xff] %vm57, %v362
    %401 = vst.msk [vmem:[%s3 + $0x30] sm:$0xff] %vm57, %v363
    %402 = vst.msk [vmem:[%s3 + $0x38] sm:$0xff] %vm57, %v364
    %403 = vst.msk [vmem:[%s3 + $0x40] sm:$0xff] %vm57, %v365
    %404 = vst.msk [vmem:[%s3 + $0x48] sm:$0xff] %vm57, %v366
    %405 = vst.msk [vmem:[%s3 + $0x50] sm:$0xff] %vm57, %v367
    %406 = vst.msk [vmem:[%s3 + $0x58] sm:$0xff] %vm57, %v368
    %407 = vst.msk [vmem:[%s3 + $0x60] sm:$0xff] %vm57, %v369
    %408 = vst.msk [vmem:[%s3 + $0x68] sm:$0xff] %vm57, %v370
    %409 = vst.msk [vmem:[%s3 + $0x70] sm:$0xff] %vm57, %v371
    %410 = vst.msk [vmem:[%s3 + $0x78] sm:$0xff] %vm57, %v372
    %411 = vst.msk [vmem:[%s3 + $0x80] sm:$0xff] %vm57, %v373
    %412 = vst.msk [vmem:[%s3 + $0x88] sm:$0xff] %vm57, %v374
    %413 = vst.msk [vmem:[%s3 + $0x90] sm:$0xff] %vm57, %v375
    %414 = vst.msk [vmem:[%s3 + $0x98] sm:$0xff] %vm57, %v376
    %415 = vst.msk [vmem:[%s3 + $0xa0] sm:$0xff] %vm57, %v377
    %416 = vst.msk [vmem:[%s3 + $0xa8] sm:$0xff] %vm57, %v378
    %417 = vst.msk [vmem:[%s3 + $0xb0] sm:$0xff] %vm57, %v379
    %418 = vst.msk [vmem:[%s3 + $0xb8] sm:$0xff] %vm57, %v380
    %419 = vst.msk [vmem:[%s3 + $0xc0] sm:$0xff] %vm57, %v381
    %420 = vst.msk [vmem:[%s3 + $0xc8] sm:$0xff] %vm57, %v382
    %421 = vst.msk [vmem:[%s3 + $0xd0] sm:$0xff] %vm57, %v383
    %422 = vst.msk [vmem:[%s3 + $0xd8] sm:$0xff] %vm57, %v384
    %423 = vst.msk [vmem:[%s3 + $0xe0] sm:$0xff] %vm57, %v385
    %424 = vst.msk [vmem:[%s3 + $0xe8] sm:$0xff] %vm57, %v386
    %425 = vst.msk [vmem:[%s3 + $0xf0] sm:$0xff] %vm57, %v387
    %426 = vst.msk [vmem:[%s3 + $0xf8] sm:$0xff] %vm57, %v388
    %427 = vst.msk [vmem:[%s3 + $0x100] sm:$0xff] %vm57, %v389
    %428 = vst.msk [vmem:[%s3 + $0x108] sm:$0xff] %vm57, %v390
    %429 = vst.msk [vmem:[%s3 + $0x110] sm:$0xff] %vm57, %v391
    %430 = vst.msk [vmem:[%s3 + $0x118] sm:$0xff] %vm57, %v392
    %431 = vst.msk [vmem:[%s3 + $0x120] sm:$0xff] %vm57, %v393
    %432 = vst.msk [vmem:[%s3 + $0x128] sm:$0xf] %vm131, %v394
    %vm433 = vcmask 778240
    %434 = vst.msk [vmem:[#allocation2] sm:$0x1] %vm433, %v140
    %435 = vst.msk [vmem:[#allocation4] sm:$0x1] %vm433, %v298
    // Predicated region
    $region14: #{tpu_custom_call.1} parent=1 // pred_check
      _
    $region15: #{tpu_custom_call.1} parent=1 // pred_check_branch
      %437 = sbr.rel (0) target = $region17
    $region16: #{tpu_custom_call.1} parent=1 // pred_region
      _
    $region17: #{tpu_custom_call.1} parent=1 // pred_fallthru
      _
    // Predicated region
    $region18: #{tpu_custom_call.1} parent=1 // pred_check
      _
    $region19: #{tpu_custom_call.1} parent=1 // pred_check_branch
      %439 = sbr.rel (0) target = $region21
    $region20: #{tpu_custom_call.1} parent=1 // pred_region
      %441 = vsyncadd [#allocation3], 0
      %s443 = sshll.u32 [#allocation2], 4
      %s444 = int_to_ptr.vmem [resolvable:$true] %s443
      %s445 = sshll.u32 %s4, 4
      %s446 = int_to_ptr.hbm [resolvable:$true] %s445
      %448 = dma.vmem_to_hbm [thread:$0]  %s444, 16, %s446, [#allocation3]
    $region21: #{tpu_custom_call.1} parent=1 // pred_fallthru
      _
    // Predicated region
    $region22: #{tpu_custom_call.1} parent=1 // pred_check
      _
    $region23: #{tpu_custom_call.1} parent=1 // pred_check_branch
      %450 = sbr.rel (0) target = $region25
    $region24: #{tpu_custom_call.1} parent=1 // pred_region
      %452 = vsyncadd [#allocation5], 0
      %s454 = sshll.u32 [#allocation4], 4
      %s455 = int_to_ptr.vmem [resolvable:$true] %s454
      %s456 = sshll.u32 %s5, 4
      %s457 = int_to_ptr.hbm [resolvable:$true] %s456
      %459 = dma.vmem_to_hbm [thread:$0]  %s455, 16, %s457, [#allocation5]
    $region25: #{tpu_custom_call.1} parent=1 // pred_fallthru
      _
    // Predicated region
    $region26: #{tpu_custom_call.1} parent=1 // pred_check
      _
    $region27: #{tpu_custom_call.1} parent=1 // pred_check_branch
      %461 = sbr.rel (0) target = $region29
    $region28: #{tpu_custom_call.1} parent=1 // pred_region
      _
    $region29: #{tpu_custom_call.1} parent=1 // pred_fallthru
      _
    // Predicated region
    $region30: #{tpu_custom_call.1} parent=1 // pred_check
      _
    $region31: #{tpu_custom_call.1} parent=1 // pred_check_branch
      %463 = sbr.rel (0) target = $region33
    $region32: #{tpu_custom_call.1} parent=1 // pred_region
      %465 = dma.done [#allocation3], 16
    $region33: #{tpu_custom_call.1} parent=1 // pred_fallthru
      _
    // Predicated region
    $region34: #{tpu_custom_call.1} parent=1 // pred_check
      _
    $region35: #{tpu_custom_call.1} parent=1 // pred_check_branch
      %467 = sbr.rel (0) target = $region37
    $region36: #{tpu_custom_call.1} parent=1 // pred_region
      %469 = dma.done [#allocation5], 16
    $region37: #{tpu_custom_call.1} parent=1 // pred_fallthru
      _
    %470 = vsyncpa [#allocation3], 1
    %471 = vsyncpa [#allocation5], 1

</llo_original>
